<compile_context>
chip_gen: v5e
topology: v5e:2x2
jax: 0.10.0
libtpu: 0.0.40
codegen_flags: <defaults>
</compile_context>

<pallas_src>
import functools
import math

import jax
import jax.numpy as jnp
from jax.experimental import pallas as pl
from jax.experimental.pallas import tpu as pltpu

LOG_STD_MIN, LOG_STD_MAX = -20.0, 2.0
SQUASH_EPS = 1e-6
HALF_LOG_2PI = 0.5 * math.log(2.0 * math.pi)

_SUB = 16  # sublane alignment safe for both f32 (8) and packed bf16 (16) tiles


def _round_up(v, m):
    return ((v + m - 1) // m) * m


def _vmem_limit_bytes():
    # Per-generation scoped-VMEM budget: ~75% of physical VMEM
    # (=> ~96 MiB on v5e/v6e with 128 MiB physical, ~48 MiB on v7x with 64 MiB).
    try:
        cap = int(pltpu.get_tpu_info().vmem_capacity_bytes)
    except Exception:
        cap = 64 * 1024 * 1024  # conservative (v7x physical VMEM)
    return min((cap * 3) // 4, 100 * 1024 * 1024)


def gaussian_actor_kernel(x_ref, w1_ref, b1_ref, w2_ref, b2_ref,
                          wh_ref, bh_ref, eps_ref, out_ref, *, act_dim):
    """One batch tile: phi MLP + fused lane-aligned (mean|log_std) head + tanh sample.

    Output is one lane-dense slab (a_pad = padded action dim, multiple of 128):
      out[:, 0:a_pad]              = action (valid values in the first act_dim lanes)
      out[:, a_pad:2*a_pad]        = raw_action
      out[:, 2*a_pad:2*a_pad+128]  = log_prob broadcast across 128 lanes (col 0 is used)
    """
    a_pad = eps_ref.shape[-1]
    tb = eps_ref.shape[0]

    # ---- phi: 2-layer MLP with ReLU (bf16 MXU inputs, f32 accumulation) ----
    h1 = jnp.dot(x_ref[...], w1_ref[...],
                 preferred_element_type=jnp.float32) + b1_ref[...]
    h1 = jnp.maximum(h1, 0.0)
    h2 = jnp.dot(h1.astype(w2_ref.dtype), w2_ref[...],
                 preferred_element_type=jnp.float32) + b2_ref[...]
    h2 = jnp.maximum(h2, 0.0)

    # ---- fused GaussianPolicyHead: one matmul, lane-aligned [mean | log_std] halves ----
    head = jnp.dot(h2.astype(wh_ref.dtype), wh_ref[...],
                   preferred_element_type=jnp.float32) + bh_ref[...]
    mean = head[:, :a_pad]
    log_std = jnp.clip(head[:, a_pad:], LOG_STD_MIN, LOG_STD_MAX)
    std = jnp.exp(log_std)

    eps = eps_ref[...]                     # f32; zero in the padded lanes
    raw = mean + std * eps                 # reparameterized sample
    action = jnp.tanh(raw)

    # Normal(mean, std).log_prob(raw): (raw - mean)/std == eps by construction, so
    # the divide is elided (differs from the literal reference only by fp rounding).
    # NOTE: log(1 - tanh^2 + 1e-6) matches the PyTorch/SAC reference exactly,
    # including its clamp-to-log(1e-6) behavior for |raw| >~ 9.
    per_lane = (-0.5 * eps * eps - log_std - HALF_LOG_2PI
                - jnp.log(1.0 - action * action + SQUASH_EPS))
    col = jax.lax.broadcasted_iota(jnp.int32, (tb, a_pad), 1)
    logp = jnp.sum(jnp.where(col < act_dim, per_lane, 0.0),
                   axis=-1, keepdims=True)

    # One full-width, lane-dense store: [action | raw | logp broadcast to 128 lanes].
    logp_block = jnp.broadcast_to(logp, (tb, 128))
    out_ref[...] = jnp.concatenate([action, raw, logp_block], axis=-1)


def _linear_init(key, fan_in, fan_out):
    # PyTorch nn.Linear default / fan_init: U(-1/sqrt(fan_in), 1/sqrt(fan_in))
    kw, kb = jax.random.split(key)
    bound = 1.0 / math.sqrt(fan_in)
    w = jax.random.uniform(kw, (fan_in, fan_out), jnp.float32, -bound, bound)
    b = jax.random.uniform(kb, (1, fan_out), jnp.float32, -bound, bound)
    return w, b


def init_params(key, in_dim, hidden_dim, act_dim):
    k1, k2, k3, k4 = jax.random.split(key, 4)
    w1, b1 = _linear_init(k1, in_dim, hidden_dim)       # phi layer 1
    w2, b2 = _linear_init(k2, hidden_dim, hidden_dim)   # phi layer 2
    wm, bm = _linear_init(k3, hidden_dim, act_dim)      # mean head
    ws, bs = _linear_init(k4, hidden_dim, act_dim)      # log_std head
    return dict(w1=w1, b1=b1, w2=w2, b2=b2, wm=wm, bm=bm, ws=ws, bs=bs)


def prepare_params(params, *, matmul_dtype=jnp.bfloat16):
    """One-time weight preparation (call ONCE, reuse the result every forward).

    Pads feature dims to 128 lanes, concatenates [mean | log_std] heads into
    lane-aligned halves and casts matmul operands to `matmul_dtype` (bf16 by
    default: the MXU runs bf16 at full rate on all generations and f32
    accumulation is used inside the kernel; biases stay f32).
    """
    f32 = jnp.float32
    in_dim, hid = params["w1"].shape
    act = params["wm"].shape[1]
    in_pad = _round_up(in_dim, 128)
    hid_pad = _round_up(hid, 128)
    act_pad = _round_up(act, 128)

    w1 = jnp.zeros((in_pad, hid_pad), f32).at[:in_dim, :hid].set(
        params["w1"]).astype(matmul_dtype)
    b1 = jnp.zeros((1, hid_pad), f32).at[:, :hid].set(params["b1"])
    w2 = jnp.zeros((hid_pad, hid_pad), f32).at[:hid, :hid].set(
        params["w2"]).astype(matmul_dtype)
    b2 = jnp.zeros((1, hid_pad), f32).at[:, :hid].set(params["b2"])
    # Fused, lane-aligned head: columns [0:128) hold mean, [128:256) hold log_std.
    wh = (jnp.zeros((hid_pad, 2 * act_pad), f32)
          .at[:hid, :act].set(params["wm"])
          .at[:hid, act_pad:act_pad + act].set(params["ws"])
          .astype(matmul_dtype))
    bh = (jnp.zeros((1, 2 * act_pad), f32)
          .at[:, :act].set(params["bm"])
          .at[:, act_pad:act_pad + act].set(params["bs"]))

    weights = dict(w1=w1, b1=b1, w2=w2, b2=b2, wh=wh, bh=bh)
    dims = dict(in_dim=in_dim, hid=hid, act=act,
                in_pad=in_pad, hid_pad=hid_pad, act_pad=act_pad)
    return dict(weights=jax.tree_util.tree_map(jnp.asarray, weights), dims=dims)


def gaussian_actor_forward(x, prepped, eps, *, tile_b=None):
    """Returns (action, log_prob, raw_action); all compute fused in one Pallas kernel.

    `prepped` must come from prepare_params() (weight padding is NOT redone per call).
    """
    # TODO(synk): deterministic / given-raw_action forward branches not implemented
    # (only the stochastic sample path of GaussianPolicyHead.sample).
    f32 = jnp.float32
    w = prepped["weights"]
    d = prepped["dims"]
    B = x.shape[0]
    in_dim, in_pad = d["in_dim"], d["in_pad"]
    hid_pad = d["hid_pad"]
    act, act_pad = d["act"], d["act_pad"]
    x_dtype = w["w1"].dtype
    out_w = 2 * act_pad + 128

    # Batch tiling: large tiles amortize the ~0.35us/step grid overhead; for big
    # batches keep >= 2 balanced tiles so ("parallel",) can shard across v7x's 2 TCs.
    if tile_b is None:
        if B <= 512:
            tile_b = _round_up(max(B, _SUB), _SUB)            # single tile
        else:
            tile_b = min(512, _round_up(pl.cdiv(B, 2), _SUB))  # >= 2 balanced tiles
    tile_b = _round_up(min(tile_b, 512), _SUB)
    b_pad = _round_up(B, tile_b)
    grid = (b_pad // tile_b,)

    # Per-call input padding only (weights were prepared once). x is cast to the
    # matmul dtype on the host (halves x-tile DMA bytes); eps stays f32.
    x_p = jnp.zeros((b_pad, in_pad), x_dtype).at[:B, :in_dim].set(x.astype(x_dtype))
    eps_p = jnp.zeros((b_pad, act_pad), f32).at[:B, :act].set(eps)

    weight_bytes = sum(int(a.size) * a.dtype.itemsize for a in w.values())
    cost = pl.CostEstimate(
        flops=2 * b_pad * (in_pad * hid_pad + hid_pad * hid_pad
                           + hid_pad * 2 * act_pad),
        transcendentals=3 * b_pad * act_pad,          # exp, tanh, log per lane
        bytes_accessed=(int(x_p.size) * x_p.dtype.itemsize
                        + 4 * b_pad * (act_pad + out_w) + weight_bytes),
    )
    vmem_limit = _vmem_limit_bytes()
    kernel = functools.partial(gaussian_actor_kernel, act_dim=act)

    def build(single_buffer_weights):
        def batched(shape):
            return pl.BlockSpec(shape, lambda i: (i, 0))

        def resident(shape):
            # Constant index_map across the grid: single-buffer to halve the
            # resident-weight VMEM footprint (most important on v7x's 64 MiB).
            if single_buffer_weights:
                return pl.BlockSpec(shape, lambda i: (0, 0),
                                    pipeline_mode=pl.Buffered(1))
            return pl.BlockSpec(shape, lambda i: (0, 0))

        grid_spec = pltpu.PrefetchScalarGridSpec(
            num_scalar_prefetch=0,
            grid=grid,
            in_specs=[
                batched((tile_b, in_pad)),        # x      (tiled over batch)
                resident((in_pad, hid_pad)),      # w1     (resident across tiles)
                resident((1, hid_pad)),           # b1
                resident((hid_pad, hid_pad)),     # w2
                resident((1, hid_pad)),           # b2
                resident((hid_pad, 2 * act_pad)), # w_head = [wm | ws] lane-aligned
                resident((1, 2 * act_pad)),       # b_head = [bm | bs]
                batched((tile_b, act_pad)),       # eps    (tiled over batch)
            ],
            out_specs=batched((tile_b, out_w)),   # packed lane-dense output slab
        )
        return pl.pallas_call(
            kernel,
            out_shape=jax.ShapeDtypeStruct((b_pad, out_w), f32),
            grid_spec=grid_spec,
            compiler_params=pltpu.CompilerParams(
                dimension_semantics=("parallel",),   # megacore sharding on v7x
                vmem_limit_bytes=vmem_limit,
            ),
            cost_estimate=cost,
        )

    args = (x_p, w["w1"], w["b1"], w["w2"], w["b2"], w["wh"], w["bh"], eps_p)
    try:
        slab = build(True)(*args)
    except Exception:
        # Fallback for JAX versions where single-buffered resident BlockSpecs
        # (pipeline_mode=pl.Buffered(1)) are not supported by the TPU pipeline.
        slab = build(False)(*args)

    action = slab[:B, :act]
    raw = slab[:B, act_pad:act_pad + act]
    logp = slab[:B, 2 * act_pad:2 * act_pad + 1]
    return action, logp, raw


if __name__ == "__main__":
    key = jax.random.PRNGKey(0)
    k_param, k_x, k_eps = jax.random.split(key, 3)

    B, IN_DIM, HIDDEN, ACT_DIM = 8, 16, 32, 4
    params = init_params(k_param, IN_DIM, HIDDEN, ACT_DIM)
    prepped = prepare_params(params)   # one-time weight pad / concat / bf16 cast

    x = jax.random.normal(k_x, (B, IN_DIM), jnp.float32)
    # Deterministic reparameterization noise (stands in for Normal.rsample's eps).
    eps = jax.random.normal(k_eps, (B, ACT_DIM), jnp.float32)

    action, log_prob, raw_action = gaussian_actor_forward(x, prepped, eps)
    jax.block_until_ready((action, log_prob, raw_action))

    # Pure-JAX reference matching the kernel numerics (bf16 MXU inputs, f32 accum).
    bf16, f32 = jnp.bfloat16, jnp.float32

    def mm(a, wgt):
        return jnp.dot(a.astype(bf16), wgt.astype(bf16), preferred_element_type=f32)

    h1 = jnp.maximum(mm(x, params["w1"]) + params["b1"], 0.0)
    h2 = jnp.maximum(mm(h1, params["w2"]) + params["b2"], 0.0)
    mean = mm(h2, params["wm"]) + params["bm"]
    log_std = jnp.clip(mm(h2, params["ws"]) + params["bs"], LOG_STD_MIN, LOG_STD_MAX)
    std = jnp.exp(log_std)
    raw_ref = mean + std * eps
    lp_ref = jnp.sum(-0.5 * ((raw_ref - mean) / std) ** 2 - log_std - HALF_LOG_2PI,
                     axis=-1, keepdims=True)
    act_ref = jnp.tanh(raw_ref)
    lp_ref = lp_ref - jnp.sum(jnp.log(1.0 - act_ref ** 2 + SQUASH_EPS),
                              axis=-1, keepdims=True)

    assert action.shape == (B, ACT_DIM) and raw_action.shape == (B, ACT_DIM)
    assert log_prob.shape == (B, 1)
    assert jnp.allclose(action, act_ref, atol=2e-3), "action mismatch"
    assert jnp.allclose(raw_action, raw_ref, atol=2e-3), "raw_action mismatch"
    assert jnp.allclose(log_prob, lp_ref, atol=1e-2), "log_prob mismatch"

    print("KERNEL_OK")
</pallas_src>

<mosaic_0001>
module attributes {stable_mosaic.version = 11 : i64} {
  func.func @gaussian_actor_kernel(%arg0: i32, %arg1: memref<16x128xbf16, #tpu.memory_space<vmem>>, %arg2: memref<128x128xbf16, #tpu.memory_space<vmem>>, %arg3: memref<1x128xf32, #tpu.memory_space<vmem>>, %arg4: memref<128x128xbf16, #tpu.memory_space<vmem>>, %arg5: memref<1x128xf32, #tpu.memory_space<vmem>>, %arg6: memref<128x256xbf16, #tpu.memory_space<vmem>>, %arg7: memref<1x256xf32, #tpu.memory_space<vmem>>, %arg8: memref<16x128xf32, #tpu.memory_space<vmem>>, %arg9: memref<16x384xf32, #tpu.memory_space<vmem>>) attributes {dimension_semantics = [#tpu.dimension_semantics<parallel>], iteration_bounds = array<i64: 1>, scalar_prefetch = 0 : i64, scratch_operands = 0 : i64, tpu.core_type = #tpu.core_type<tc>, window_params = [{transform_indices = @transform_0, window_bounds = array<i64: 16, 128>}, {pipeline_mode = #tpu.pipeline_mode<synchronous>, transform_indices = @transform_1, window_bounds = array<i64: 128, 128>}, {pipeline_mode = #tpu.pipeline_mode<synchronous>, transform_indices = @transform_2, window_bounds = array<i64: 1, 128>}, {pipeline_mode = #tpu.pipeline_mode<synchronous>, transform_indices = @transform_3, window_bounds = array<i64: 128, 128>}, {pipeline_mode = #tpu.pipeline_mode<synchronous>, transform_indices = @transform_4, window_bounds = array<i64: 1, 128>}, {pipeline_mode = #tpu.pipeline_mode<synchronous>, transform_indices = @transform_5, window_bounds = array<i64: 128, 256>}, {pipeline_mode = #tpu.pipeline_mode<synchronous>, transform_indices = @transform_6, window_bounds = array<i64: 1, 256>}, {transform_indices = @transform_7, window_bounds = array<i64: 16, 128>}, {transform_indices = @transform_8, window_bounds = array<i64: 16, 384>}]} {
    %c0 = arith.constant 0 : index
    %c0_0 = arith.constant 0 : index
    %0 = vector.load %arg1[%c0, %c0_0] : memref<16x128xbf16, #tpu.memory_space<vmem>>, vector<16x128xbf16>
    %c0_1 = arith.constant 0 : index
    %c0_2 = arith.constant 0 : index
    %1 = vector.load %arg2[%c0_1, %c0_2] : memref<128x128xbf16, #tpu.memory_space<vmem>>, vector<128x128xbf16>
    %cst = arith.constant dense<0.000000e+00> : vector<16x128xf32>
    %2 = tpu.matmul %0, %1, %cst {dimension_numbers = #tpu.dot_dimension_numbers<[1], [0], [0], [1], [0, 0, 1, 1], [], []>} : vector<16x128xbf16>, vector<128x128xbf16>, vector<16x128xf32> -> vector<16x128xf32>
    %c0_3 = arith.constant 0 : index
    %c0_4 = arith.constant 0 : index
    %3 = vector.load %arg3[%c0_3, %c0_4] : memref<1x128xf32, #tpu.memory_space<vmem>>, vector<1x128xf32>
    %4 = vector.broadcast %3 : vector<1x128xf32> to vector<16x128xf32>
    %5 = arith.addf %2, %4 : vector<16x128xf32>
    %cst_5 = arith.constant 0.000000e+00 : f32
    %6 = vector.broadcast %cst_5 : f32 to vector<16x128xf32>
    %7 = arith.maximumf %5, %6 : vector<16x128xf32>
    %8 = arith.truncf %7 : vector<16x128xf32> to vector<16x128xbf16>
    %c0_6 = arith.constant 0 : index
    %c0_7 = arith.constant 0 : index
    %9 = vector.load %arg4[%c0_6, %c0_7] : memref<128x128xbf16, #tpu.memory_space<vmem>>, vector<128x128xbf16>
    %cst_8 = arith.constant dense<0.000000e+00> : vector<16x128xf32>
    %10 = tpu.matmul %8, %9, %cst_8 {dimension_numbers = #tpu.dot_dimension_numbers<[1], [0], [0], [1], [0, 0, 1, 1], [], []>} : vector<16x128xbf16>, vector<128x128xbf16>, vector<16x128xf32> -> vector<16x128xf32>
    %c0_9 = arith.constant 0 : index
    %c0_10 = arith.constant 0 : index
    %11 = vector.load %arg5[%c0_9, %c0_10] : memref<1x128xf32, #tpu.memory_space<vmem>>, vector<1x128xf32>
    %12 = vector.broadcast %11 : vector<1x128xf32> to vector<16x128xf32>
    %13 = arith.addf %10, %12 : vector<16x128xf32>
    %cst_11 = arith.constant 0.000000e+00 : f32
    %14 = vector.broadcast %cst_11 : f32 to vector<16x128xf32>
    %15 = arith.maximumf %13, %14 : vector<16x128xf32>
    %16 = arith.truncf %15 : vector<16x128xf32> to vector<16x128xbf16>
    %c0_12 = arith.constant 0 : index
    %c0_13 = arith.constant 0 : index
    %17 = vector.load %arg6[%c0_12, %c0_13] : memref<128x256xbf16, #tpu.memory_space<vmem>>, vector<128x256xbf16>
    %cst_14 = arith.constant dense<0.000000e+00> : vector<16x256xf32>
    %18 = tpu.matmul %16, %17, %cst_14 {dimension_numbers = #tpu.dot_dimension_numbers<[1], [0], [0], [1], [0, 0, 1, 1], [], []>} : vector<16x128xbf16>, vector<128x256xbf16>, vector<16x256xf32> -> vector<16x256xf32>
    %c0_15 = arith.constant 0 : index
    %c0_16 = arith.constant 0 : index
    %19 = vector.load %arg7[%c0_15, %c0_16] : memref<1x256xf32, #tpu.memory_space<vmem>>, vector<1x256xf32>
    %20 = vector.broadcast %19 : vector<1x256xf32> to vector<16x256xf32>
    %21 = arith.addf %18, %20 : vector<16x256xf32>
    %22 = vector.extract_strided_slice %21 {offsets = [0, 0], sizes = [16, 128], strides = [1, 1]} : vector<16x256xf32> to vector<16x128xf32>
    %23 = vector.extract_strided_slice %21 {offsets = [0, 128], sizes = [16, 128], strides = [1, 1]} : vector<16x256xf32> to vector<16x128xf32>
    %cst_17 = arith.constant -2.000000e+01 : f32
    %cst_18 = arith.constant 2.000000e+00 : f32
    %24 = vector.broadcast %cst_17 : f32 to vector<16x128xf32>
    %25 = arith.maximumf %24, %23 : vector<16x128xf32>
    %26 = vector.broadcast %cst_18 : f32 to vector<16x128xf32>
    %27 = arith.minimumf %26, %25 : vector<16x128xf32>
    %28 = math.exp %27 : vector<16x128xf32>
    %c0_19 = arith.constant 0 : index
    %c0_20 = arith.constant 0 : index
    %29 = vector.load %arg8[%c0_19, %c0_20] : memref<16x128xf32, #tpu.memory_space<vmem>>, vector<16x128xf32>
    %30 = arith.mulf %28, %29 : vector<16x128xf32>
    %31 = arith.addf %22, %30 : vector<16x128xf32>
    %32 = math.tanh %31 : vector<16x128xf32>
    %cst_21 = arith.constant -5.000000e-01 : f32
    %33 = vector.broadcast %cst_21 : f32 to vector<16x128xf32>
    %34 = arith.mulf %33, %29 : vector<16x128xf32>
    %35 = arith.mulf %34, %29 : vector<16x128xf32>
    %36 = arith.subf %35, %27 : vector<16x128xf32>
    %cst_22 = arith.constant 0.918938517 : f32
    %37 = vector.broadcast %cst_22 : f32 to vector<16x128xf32>
    %38 = arith.subf %36, %37 : vector<16x128xf32>
    %39 = arith.mulf %32, %32 : vector<16x128xf32>
    %cst_23 = arith.constant 1.000000e+00 : f32
    %40 = vector.broadcast %cst_23 : f32 to vector<16x128xf32>
    %41 = arith.subf %40, %39 : vector<16x128xf32>
    %cst_24 = arith.constant 9.99999997E-7 : f32
    %42 = vector.broadcast %cst_24 : f32 to vector<16x128xf32>
    %43 = arith.addf %41, %42 : vector<16x128xf32>
    %44 = math.log %43 : vector<16x128xf32>
    %45 = arith.subf %38, %44 : vector<16x128xf32>
    %46 = tpu.iota {dimensions = array<i32: 1>} : vector<16x128xi32>
    %c4_i32 = arith.constant 4 : i32
    %47 = vector.broadcast %c4_i32 : i32 to vector<16x128xi32>
    %48 = arith.cmpi slt, %46, %47 : vector<16x128xi32>
    %cst_25 = arith.constant 0.000000e+00 : f32
    %49 = vector.broadcast %cst_25 : f32 to vector<16x128xf32>
    %50 = arith.select %48, %45, %49 : vector<16x128xi1>, vector<16x128xf32>
    %cst_26 = arith.constant dense<0.000000e+00> : vector<16xf32>
    %51 = vector.multi_reduction <add>, %50, %cst_26 [1] : vector<16x128xf32> to vector<16xf32>
    %52 = vector.shape_cast %51 : vector<16xf32> to vector<16x1xf32>
    %53 = vector.shape_cast %52 : vector<16x1xf32> to vector<16x1xf32>
    %54 = vector.broadcast %53 : vector<16x1xf32> to vector<16x128xf32>
    %55 = tpu.concatenate %32, %31, %54 in 1 : vector<16x128xf32>, vector<16x128xf32>, vector<16x128xf32> -> vector<16x384xf32>
    %c0_27 = arith.constant 0 : index
    %c0_28 = arith.constant 0 : index
    %56 = vector.load %arg9[%c0_27, %c0_28] : memref<16x384xf32, #tpu.memory_space<vmem>>, vector<16x384xf32>
    tpu.vector_store %arg9[%c0_27, %c0_28], %55 {strides = array<i32>} : memref<16x384xf32, #tpu.memory_space<vmem>>, vector<16x384xf32>,
    return
  }
  func.func @transform_0(%arg0: i32) -> (i32, i32) {
    %c0_i32 = arith.constant 0 : i32
    %c0_i32_0 = arith.constant 0 : i32
    return %arg0, %c0_i32 : i32, i32
  }
  func.func @transform_1(%arg0: i32) -> (i32, i32) {
    %c0_i32 = arith.constant 0 : i32
    %c0_i32_0 = arith.constant 0 : i32
    %c0_i32_1 = arith.constant 0 : i32
    return %c0_i32, %c0_i32_0 : i32, i32
  }
  func.func @transform_2(%arg0: i32) -> (i32, i32) {
    %c0_i32 = arith.constant 0 : i32
    %c0_i32_0 = arith.constant 0 : i32
    %c0_i32_1 = arith.constant 0 : i32
    return %c0_i32, %c0_i32_0 : i32, i32
  }
  func.func @transform_3(%arg0: i32) -> (i32, i32) {
    %c0_i32 = arith.constant 0 : i32
    %c0_i32_0 = arith.constant 0 : i32
    %c0_i32_1 = arith.constant 0 : i32
    return %c0_i32, %c0_i32_0 : i32, i32
  }
  func.func @transform_4(%arg0: i32) -> (i32, i32) {
    %c0_i32 = arith.constant 0 : i32
    %c0_i32_0 = arith.constant 0 : i32
    %c0_i32_1 = arith.constant 0 : i32
    return %c0_i32, %c0_i32_0 : i32, i32
  }
  func.func @transform_5(%arg0: i32) -> (i32, i32) {
    %c0_i32 = arith.constant 0 : i32
    %c0_i32_0 = arith.constant 0 : i32
    %c0_i32_1 = arith.constant 0 : i32
    return %c0_i32, %c0_i32_0 : i32, i32
  }
  func.func @transform_6(%arg0: i32) -> (i32, i32) {
    %c0_i32 = arith.constant 0 : i32
    %c0_i32_0 = arith.constant 0 : i32
    %c0_i32_1 = arith.constant 0 : i32
    return %c0_i32, %c0_i32_0 : i32, i32
  }
  func.func @transform_7(%arg0: i32) -> (i32, i32) {
    %c0_i32 = arith.constant 0 : i32
    %c0_i32_0 = arith.constant 0 : i32
    return %arg0, %c0_i32 : i32, i32
  }
  func.func @transform_8(%arg0: i32) -> (i32, i32) {
    %c0_i32 = arith.constant 0 : i32
    %c0_i32_0 = arith.constant 0 : i32
    return %arg0, %c0_i32 : i32, i32
  }
}

module attributes {stable_mosaic.version = 11 : i64} {
  func.func @gaussian_actor_kernel(%arg0: i32, %arg1: memref<16x128xbf16, #tpu.memory_space<vmem>>, %arg2: memref<128x128xbf16, #tpu.memory_space<vmem>>, %arg3: memref<1x128xf32, #tpu.memory_space<vmem>>, %arg4: memref<128x128xbf16, #tpu.memory_space<vmem>>, %arg5: memref<1x128xf32, #tpu.memory_space<vmem>>, %arg6: memref<128x256xbf16, #tpu.memory_space<vmem>>, %arg7: memref<1x256xf32, #tpu.memory_space<vmem>>, %arg8: memref<16x128xf32, #tpu.memory_space<vmem>>, %arg9: memref<16x384xf32, #tpu.memory_space<vmem>>) attributes {dimension_semantics = [#tpu.dimension_semantics<parallel>], iteration_bounds = array<i64: 1>, scalar_prefetch = 0 : i64, scratch_operands = 0 : i64, tpu.core_type = #tpu.core_type<tc>, window_params = [{transform_indices = @transform_0, window_bounds = array<i64: 16, 128>}, {pipeline_mode = #tpu.pipeline_mode<synchronous>, transform_indices = @transform_1, window_bounds = array<i64: 128, 128>}, {pipeline_mode = #tpu.pipeline_mode<synchronous>, transform_indices = @transform_2, window_bounds = array<i64: 1, 128>}, {pipeline_mode = #tpu.pipeline_mode<synchronous>, transform_indices = @transform_3, window_bounds = array<i64: 128, 128>}, {pipeline_mode = #tpu.pipeline_mode<synchronous>, transform_indices = @transform_4, window_bounds = array<i64: 1, 128>}, {pipeline_mode = #tpu.pipeline_mode<synchronous>, transform_indices = @transform_5, window_bounds = array<i64: 128, 256>}, {pipeline_mode = #tpu.pipeline_mode<synchronous>, transform_indices = @transform_6, window_bounds = array<i64: 1, 256>}, {transform_indices = @transform_7, window_bounds = array<i64: 16, 128>}, {transform_indices = @transform_8, window_bounds = array<i64: 16, 384>}]} {
    %c0 = arith.constant 0 : index
    %c0_0 = arith.constant 0 : index
    %0 = vector.load %arg1[%c0, %c0_0] : memref<16x128xbf16, #tpu.memory_space<vmem>>, vector<16x128xbf16>
    %c0_1 = arith.constant 0 : index
    %c0_2 = arith.constant 0 : index
    %1 = vector.load %arg2[%c0_1, %c0_2] : memref<128x128xbf16, #tpu.memory_space<vmem>>, vector<128x128xbf16>
    %cst = arith.constant dense<0.000000e+00> : vector<16x128xf32>
    %2 = tpu.matmul %0, %1, %cst {dimension_numbers = #tpu.dot_dimension_numbers<[1], [0], [0], [1], [0, 0, 1, 1], [], []>} : vector<16x128xbf16>, vector<128x128xbf16>, vector<16x128xf32> -> vector<16x128xf32>
    %c0_3 = arith.constant 0 : index
    %c0_4 = arith.constant 0 : index
    %3 = vector.load %arg3[%c0_3, %c0_4] : memref<1x128xf32, #tpu.memory_space<vmem>>, vector<1x128xf32>
    %4 = vector.broadcast %3 : vector<1x128xf32> to vector<16x128xf32>
    %5 = arith.addf %2, %4 : vector<16x128xf32>
    %cst_5 = arith.constant 0.000000e+00 : f32
    %6 = vector.broadcast %cst_5 : f32 to vector<16x128xf32>
    %7 = arith.maximumf %5, %6 : vector<16x128xf32>
    %8 = arith.truncf %7 : vector<16x128xf32> to vector<16x128xbf16>
    %c0_6 = arith.constant 0 : index
    %c0_7 = arith.constant 0 : index
    %9 = vector.load %arg4[%c0_6, %c0_7] : memref<128x128xbf16, #tpu.memory_space<vmem>>, vector<128x128xbf16>
    %cst_8 = arith.constant dense<0.000000e+00> : vector<16x128xf32>
    %10 = tpu.matmul %8, %9, %cst_8 {dimension_numbers = #tpu.dot_dimension_numbers<[1], [0], [0], [1], [0, 0, 1, 1], [], []>} : vector<16x128xbf16>, vector<128x128xbf16>, vector<16x128xf32> -> vector<16x128xf32>
    %c0_9 = arith.constant 0 : index
    %c0_10 = arith.constant 0 : index
    %11 = vector.load %arg5[%c0_9, %c0_10] : memref<1x128xf32, #tpu.memory_space<vmem>>, vector<1x128xf32>
    %12 = vector.broadcast %11 : vector<1x128xf32> to vector<16x128xf32>
    %13 = arith.addf %10, %12 : vector<16x128xf32>
    %cst_11 = arith.constant 0.000000e+00 : f32
    %14 = vector.broadcast %cst_11 : f32 to vector<16x128xf32>
    %15 = arith.maximumf %13, %14 : vector<16x128xf32>
    %16 = arith.truncf %15 : vector<16x128xf32> to vector<16x128xbf16>
    %c0_12 = arith.constant 0 : index
    %c0_13 = arith.constant 0 : index
    %17 = vector.load %arg6[%c0_12, %c0_13] : memref<128x256xbf16, #tpu.memory_space<vmem>>, vector<128x256xbf16>
    %cst_14 = arith.constant dense<0.000000e+00> : vector<16x256xf32>
    %18 = tpu.matmul %16, %17, %cst_14 {dimension_numbers = #tpu.dot_dimension_numbers<[1], [0], [0], [1], [0, 0, 1, 1], [], []>} : vector<16x128xbf16>, vector<128x256xbf16>, vector<16x256xf32> -> vector<16x256xf32>
    %c0_15 = arith.constant 0 : index
    %c0_16 = arith.constant 0 : index
    %19 = vector.load %arg7[%c0_15, %c0_16] : memref<1x256xf32, #tpu.memory_space<vmem>>, vector<1x256xf32>
    %20 = vector.broadcast %19 : vector<1x256xf32> to vector<16x256xf32>
    %21 = arith.addf %18, %20 : vector<16x256xf32>
    %22 = vector.extract_strided_slice %21 {offsets = [0, 0], sizes = [16, 128], strides = [1, 1]} : vector<16x256xf32> to vector<16x128xf32>
    %23 = vector.extract_strided_slice %21 {offsets = [0, 128], sizes = [16, 128], strides = [1, 1]} : vector<16x256xf32> to vector<16x128xf32>
    %cst_17 = arith.constant -2.000000e+01 : f32
    %cst_18 = arith.constant 2.000000e+00 : f32
    %24 = vector.broadcast %cst_17 : f32 to vector<16x128xf32>
    %25 = arith.maximumf %24, %23 : vector<16x128xf32>
    %26 = vector.broadcast %cst_18 : f32 to vector<16x128xf32>
    %27 = arith.minimumf %26, %25 : vector<16x128xf32>
    %28 = math.exp %27 : vector<16x128xf32>
    %c0_19 = arith.constant 0 : index
    %c0_20 = arith.constant 0 : index
    %29 = vector.load %arg8[%c0_19, %c0_20] : memref<16x128xf32, #tpu.memory_space<vmem>>, vector<16x128xf32>
    %30 = arith.mulf %28, %29 : vector<16x128xf32>
    %31 = arith.addf %22, %30 : vector<16x128xf32>
    %32 = math.tanh %31 : vector<16x128xf32>
    %cst_21 = arith.constant -5.000000e-01 : f32
    %33 = vector.broadcast %cst_21 : f32 to vector<16x128xf32>
    %34 = arith.mulf %33, %29 : vector<16x128xf32>
    %35 = arith.mulf %34, %29 : vector<16x128xf32>
    %36 = arith.subf %35, %27 : vector<16x128xf32>
    %cst_22 = arith.constant 0.918938517 : f32
    %37 = vector.broadcast %cst_22 : f32 to vector<16x128xf32>
    %38 = arith.subf %36, %37 : vector<16x128xf32>
    %39 = arith.mulf %32, %32 : vector<16x128xf32>
    %cst_23 = arith.constant 1.000000e+00 : f32
    %40 = vector.broadcast %cst_23 : f32 to vector<16x128xf32>
    %41 = arith.subf %40, %39 : vector<16x128xf32>
    %cst_24 = arith.constant 9.99999997E-7 : f32
    %42 = vector.broadcast %cst_24 : f32 to vector<16x128xf32>
    %43 = arith.addf %41, %42 : vector<16x128xf32>
    %44 = math.log %43 : vector<16x128xf32>
    %45 = arith.subf %38, %44 : vector<16x128xf32>
    %46 = tpu.iota {dimensions = array<i32: 1>} : vector<16x128xi32>
    %c4_i32 = arith.constant 4 : i32
    %47 = vector.broadcast %c4_i32 : i32 to vector<16x128xi32>
    %48 = arith.cmpi slt, %46, %47 : vector<16x128xi32>
    %cst_25 = arith.constant 0.000000e+00 : f32
    %49 = vector.broadcast %cst_25 : f32 to vector<16x128xf32>
    %50 = arith.select %48, %45, %49 : vector<16x128xi1>, vector<16x128xf32>
    %cst_26 = arith.constant dense<0.000000e+00> : vector<16xf32>
    %51 = vector.multi_reduction <add>, %50, %cst_26 [1] : vector<16x128xf32> to vector<16xf32>
    %52 = vector.shape_cast %51 : vector<16xf32> to vector<16x1xf32>
    %53 = vector.shape_cast %52 : vector<16x1xf32> to vector<16x1xf32>
    %54 = vector.broadcast %53 : vector<16x1xf32> to vector<16x128xf32>
    %55 = tpu.concatenate %32, %31, %54 in 1 : vector<16x128xf32>, vector<16x128xf32>, vector<16x128xf32> -> vector<16x384xf32>
    %c0_27 = arith.constant 0 : index
    %c0_28 = arith.constant 0 : index
    %56 = vector.load %arg9[%c0_27, %c0_28] : memref<16x384xf32, #tpu.memory_space<vmem>>, vector<16x384xf32>
    tpu.vector_store %arg9[%c0_27, %c0_28], %55 {strides = array<i32>} : memref<16x384xf32, #tpu.memory_space<vmem>>, vector<16x384xf32>,
    return
  }
  func.func @transform_0(%arg0: i32) -> (i32, i32) {
    %c0_i32 = arith.constant 0 : i32
    %c0_i32_0 = arith.constant 0 : i32
    return %arg0, %c0_i32 : i32, i32
  }
  func.func @transform_1(%arg0: i32) -> (i32, i32) {
    %c0_i32 = arith.constant 0 : i32
    %c0_i32_0 = arith.constant 0 : i32
    %c0_i32_1 = arith.constant 0 : i32
    return %c0_i32, %c0_i32_0 : i32, i32
  }
  func.func @transform_2(%arg0: i32) -> (i32, i32) {
    %c0_i32 = arith.constant 0 : i32
    %c0_i32_0 = arith.constant 0 : i32
    %c0_i32_1 = arith.constant 0 : i32
    return %c0_i32, %c0_i32_0 : i32, i32
  }
  func.func @transform_3(%arg0: i32) -> (i32, i32) {
    %c0_i32 = arith.constant 0 : i32
    %c0_i32_0 = arith.constant 0 : i32
    %c0_i32_1 = arith.constant 0 : i32
    return %c0_i32, %c0_i32_0 : i32, i32
  }
  func.func @transform_4(%arg0: i32) -> (i32, i32) {
    %c0_i32 = arith.constant 0 : i32
    %c0_i32_0 = arith.constant 0 : i32
    %c0_i32_1 = arith.constant 0 : i32
    return %c0_i32, %c0_i32_0 : i32, i32
  }
  func.func @transform_5(%arg0: i32) -> (i32, i32) {
    %c0_i32 = arith.constant 0 : i32
    %c0_i32_0 = arith.constant 0 : i32
    %c0_i32_1 = arith.constant 0 : i32
    return %c0_i32, %c0_i32_0 : i32, i32
  }
  func.func @transform_6(%arg0: i32) -> (i32, i32) {
    %c0_i32 = arith.constant 0 : i32
    %c0_i32_0 = arith.constant 0 : i32
    %c0_i32_1 = arith.constant 0 : i32
    return %c0_i32, %c0_i32_0 : i32, i32
  }
  func.func @transform_7(%arg0: i32) -> (i32, i32) {
    %c0_i32 = arith.constant 0 : i32
    %c0_i32_0 = arith.constant 0 : i32
    return %arg0, %c0_i32 : i32, i32
  }
  func.func @transform_8(%arg0: i32) -> (i32, i32) {
    %c0_i32 = arith.constant 0 : i32
    %c0_i32_0 = arith.constant 0 : i32
    return %arg0, %c0_i32 : i32, i32
  }
}

</mosaic_0001>

<llo_original>
// kernel: tpu_custom_call.1
$region0: #{tpu_custom_call.1}
  #allocation0 [shape = 'u32[]', space=smem, size = 0x4, offset = 0x4, fixed_abs, tag = 'smem constant byte address 0x4 - core index']
  #allocation1 [shape = 'u32[72,128]{1,0:T(1,128)}', space=vmem, size = 0x9000, scoped, tag = 'internal scratch']
  %s0 = inlined_call_operand.hbm [shape: bf16[16,128], index: 0, kind: input, shape index: {}]
  %s1 = inlined_call_operand.hbm [shape: bf16[128,128], index: 1, kind: input, shape index: {}]
  %s2 = inlined_call_operand.vmem [shape: f32[1,128], index: 2, kind: input, shape index: {}]
  %s3 = inlined_call_operand.hbm [shape: bf16[128,128], index: 3, kind: input, shape index: {}]
  %s4 = inlined_call_operand.hbm [shape: f32[1,128], index: 4, kind: input, shape index: {}]
  %s5 = inlined_call_operand.hbm [shape: bf16[128,256], index: 5, kind: input, shape index: {}]
  %s6 = inlined_call_operand.vmem [shape: f32[1,256], index: 6, kind: input, shape index: {}]
  %s7 = inlined_call_operand.hbm [shape: f32[16,128], index: 7, kind: input, shape index: {}]
  %s8 = inlined_call_operand.hbm [shape: f32[16,384], index: 8, kind: output, shape index: {}]
  %s9 = sld [smem:[#allocation0]]
  $region66: #{tpu_custom_call.1} parent=0
    _
  %s11 = ssub.s32 1, %s9
  %s12 = scalar_select 0, %s11, %s9
  $region1: #{tpu_custom_call.1} parent=0
    #allocation2 [shape = 'u8[4096]{0}', space=vmem, size = 0x1000, scoped, tag = 'input window, operand 0, single buffered']
    #allocation3 [shape = 's32[1]{0}', space=sflag, size = 0x4, scoped, tag = 'scoped memory for tpu_custom_call.1']
    #allocation4 [shape = 's32[1]{0}', space=sflag, size = 0x4, scoped, tag = 'scoped memory for tpu_custom_call.1']
    #allocation5 [shape = 'u8[32768]{0}', space=vmem, size = 0x8000, scoped, tag = 'input window, operand 1, single buffered']
    #allocation6 [shape = 's32[1]{0}', space=sflag, size = 0x4, scoped, tag = 'scoped memory for tpu_custom_call.1']
    #allocation7 [shape = 'u8[32768]{0}', space=vmem, size = 0x8000, scoped, tag = 'input window, operand 3, single buffered']
    #allocation8 [shape = 'u8[512]{0}', space=vmem, size = 0x400, scoped, tag = 'input window, operand 4, single buffered']
    #allocation9 [shape = 's32[1]{0}', space=sflag, size = 0x4, scoped, tag = 'scoped memory for tpu_custom_call.1']
    #allocation10 [shape = 'u8[65536]{0}', space=vmem, size = 0x10000, scoped, tag = 'input window, operand 5, single buffered']
    #allocation11 [shape = 'u8[8192]{0}', space=vmem, size = 0x2000, scoped, tag = 'input window, operand 7, single buffered']
    #allocation12 [shape = 's32[1]{0}', space=sflag, size = 0x4, scoped, tag = 'scoped memory for tpu_custom_call.1']
    #allocation13 [shape = 'u8[24576]{0}', space=vmem, size = 0x6000, scoped, tag = 'output window, operand 0, single buffered']
    %13 = vsyncpa [#allocation3], 0
    %14 = vsyncpa [#allocation6], 0
    %15 = vsyncpa [#allocation9], 0
    %16 = vsyncpa [#allocation12], 0
    %17 = vsyncpa [#allocation4], 0
    // Predicated region
    $region2: #{tpu_custom_call.1} parent=1 // pred_check
      _
    $region3: #{tpu_custom_call.1} parent=1 // pred_check_branch
      %19 = sbr.rel (0) target = $region5
    $region4: #{tpu_custom_call.1} parent=1 // pred_region
      %21 = vsyncadd [#allocation3], 0
      %s22 = sshll.u32 %s0, 4
      %s23 = int_to_ptr.hbm [resolvable:$true] %s22
      %s24 = sshll.u32 [#allocation2], 4
      %s25 = int_to_ptr.vmem [resolvable:$true] %s24
      %30 = dma.hbm_to_vmem [thread:$0]  %s23, 128, %s25, [#allocation3], 64, 64, 4
    $region5: #{tpu_custom_call.1} parent=1 // pred_fallthru
      _
    // Predicated region
    $region6: #{tpu_custom_call.1} parent=1 // pred_check
      _
    $region7: #{tpu_custom_call.1} parent=1 // pred_check_branch
      %32 = sbr.rel (0) target = $region9
    $region8: #{tpu_custom_call.1} parent=1 // pred_region
      %34 = vsyncadd [#allocation6], 0
      %s35 = sshll.u32 %s1, 4
      %s36 = int_to_ptr.hbm [resolvable:$true] %s35
      %s37 = sshll.u32 [#allocation5], 4
      %s38 = int_to_ptr.vmem [resolvable:$true] %s37
      %43 = dma.hbm_to_vmem [thread:$0]  %s36, 1024, %s38, [#allocation6], 64, 64, 4
    $region9: #{tpu_custom_call.1} parent=1 // pred_fallthru
      _
    // Predicated region
    $region10: #{tpu_custom_call.1} parent=1 // pred_check
      _
    $region11: #{tpu_custom_call.1} parent=1 // pred_check_branch
      %45 = sbr.rel (0) target = $region13
    $region12: #{tpu_custom_call.1} parent=1 // pred_region
      _
    $region13: #{tpu_custom_call.1} parent=1 // pred_fallthru
      _
    // Predicated region
    $region14: #{tpu_custom_call.1} parent=1 // pred_check
      _
    $region15: #{tpu_custom_call.1} parent=1 // pred_check_branch
      %47 = sbr.rel (0) target = $region17
    $region16: #{tpu_custom_call.1} parent=1 // pred_region
      %49 = vsyncadd [#allocation6], 0
      %s50 = sshll.u32 %s3, 4
      %s51 = int_to_ptr.hbm [resolvable:$true] %s50
      %s52 = sshll.u32 [#allocation7], 4
      %s53 = int_to_ptr.vmem [resolvable:$true] %s52
      %58 = dma.hbm_to_vmem [thread:$0]  %s51, 1024, %s53, [#allocation6], 64, 64, 4
    $region17: #{tpu_custom_call.1} parent=1 // pred_fallthru
      _
    // Predicated region
    $region18: #{tpu_custom_call.1} parent=1 // pred_check
      _
    $region19: #{tpu_custom_call.1} parent=1 // pred_check_branch
      %60 = sbr.rel (0) target = $region21
    $region20: #{tpu_custom_call.1} parent=1 // pred_region
      %62 = vsyncadd [#allocation9], 0
      %s64 = sshll.u32 %s4, 4
      %s65 = int_to_ptr.hbm [resolvable:$true] %s64
      %s66 = sshll.u32 [#allocation8], 4
      %s67 = int_to_ptr.vmem [resolvable:$true] %s66
      %69 = dma.hbm_to_vmem [thread:$0]  %s65, 16, %s67, [#allocation9]
    $region21: #{tpu_custom_call.1} parent=1 // pred_fallthru
      _
    // Predicated region
    $region22: #{tpu_custom_call.1} parent=1 // pred_check
      _
    $region23: #{tpu_custom_call.1} parent=1 // pred_check_branch
      %71 = sbr.rel (0) target = $region25
    $region24: #{tpu_custom_call.1} parent=1 // pred_region
      %73 = vsyncadd [#allocation9], 0
      %s74 = sshll.u32 %s5, 4
      %s75 = int_to_ptr.hbm [resolvable:$true] %s74
      %s76 = sshll.u32 [#allocation10], 4
      %s77 = int_to_ptr.vmem [resolvable:$true] %s76
      %82 = dma.hbm_to_vmem [thread:$0]  %s75, 2048, %s77, [#allocation9], 128, 128, 8
    $region25: #{tpu_custom_call.1} parent=1 // pred_fallthru
      _
    // Predicated region
    $region26: #{tpu_custom_call.1} parent=1 // pred_check
      _
    $region27: #{tpu_custom_call.1} parent=1 // pred_check_branch
      %84 = sbr.rel (0) target = $region29
    $region28: #{tpu_custom_call.1} parent=1 // pred_region
      _
    $region29: #{tpu_custom_call.1} parent=1 // pred_fallthru
      _
    // Predicated region
    $region30: #{tpu_custom_call.1} parent=1 // pred_check
      _
    $region31: #{tpu_custom_call.1} parent=1 // pred_check_branch
      %86 = sbr.rel (0) target = $region33
    $region32: #{tpu_custom_call.1} parent=1 // pred_region
      %88 = vsyncadd [#allocation12], 0
      %s89 = sshll.u32 %s7, 4
      %s90 = int_to_ptr.hbm [resolvable:$true] %s89
      %s91 = sshll.u32 [#allocation11], 4
      %s92 = int_to_ptr.vmem [resolvable:$true] %s91
      %97 = dma.hbm_to_vmem [thread:$0]  %s90, 256, %s92, [#allocation12], 128, 128, 8
    $region33: #{tpu_custom_call.1} parent=1 // pred_fallthru
      _
    // Predicated region
    $region34: #{tpu_custom_call.1} parent=1 // pred_check
      _
    $region35: #{tpu_custom_call.1} parent=1 // pred_check_branch
      %99 = sbr.rel (0) target = $region37
    $region36: #{tpu_custom_call.1} parent=1 // pred_region
      %101 = dma.done [#allocation3], 128
    $region37: #{tpu_custom_call.1} parent=1 // pred_fallthru
      _
    // Predicated region
    $region38: #{tpu_custom_call.1} parent=1 // pred_check
      _
    $region39: #{tpu_custom_call.1} parent=1 // pred_check_branch
      %103 = sbr.rel (0) target = $region41
    $region40: #{tpu_custom_call.1} parent=1 // pred_region
      %105 = dma.done [#allocation6], 1024
    $region41: #{tpu_custom_call.1} parent=1 // pred_fallthru
      _
    // Predicated region
    $region42: #{tpu_custom_call.1} parent=1 // pred_check
      _
    $region43: #{tpu_custom_call.1} parent=1 // pred_check_branch
      %107 = sbr.rel (0) target = $region45
    $region44: #{tpu_custom_call.1} parent=1 // pred_region
      %109 = dma.done [#allocation6], 1024
    $region45: #{tpu_custom_call.1} parent=1 // pred_fallthru
      _
    // Predicated region
    $region46: #{tpu_custom_call.1} parent=1 // pred_check
      _
    $region47: #{tpu_custom_call.1} parent=1 // pred_check_branch
      %111 = sbr.rel (0) target = $region49
    $region48: #{tpu_custom_call.1} parent=1 // pred_region
      %113 = dma.done [#allocation9], 16
    $region49: #{tpu_custom_call.1} parent=1 // pred_fallthru
      _
    // Predicated region
    $region50: #{tpu_custom_call.1} parent=1 // pred_check
      _
    $region51: #{tpu_custom_call.1} parent=1 // pred_check_branch
      %115 = sbr.rel (0) target = $region53
    $region52: #{tpu_custom_call.1} parent=1 // pred_region
      %117 = dma.done [#allocation9], 2048
    $region53: #{tpu_custom_call.1} parent=1 // pred_fallthru
      _
    // Predicated region
    $region54: #{tpu_custom_call.1} parent=1 // pred_check
      _
    $region55: #{tpu_custom_call.1} parent=1 // pred_check_branch
      %119 = sbr.rel (0) target = $region57
    $region56: #{tpu_custom_call.1} parent=1 // pred_region
      %121 = dma.done [#allocation12], 256
    $region57: #{tpu_custom_call.1} parent=1 // pred_fallthru
      _
    %v122 = vld [vmem:[#allocation2] sm:$0xf]
    %v123 = vld [vmem:[#allocation2 + $0x4] sm:$0xf]
    %v124 = vld [vmem:[#allocation5] sm:$0xf]
    %v125 = vld [vmem:[#allocation5 + $0x4] sm:$0xf]
    %v126 = vld [vmem:[#allocation5 + $0x8] sm:$0xf]
    %v127 = vld [vmem:[#allocation5 + $0xc] sm:$0xf]
    %v128 = vld [vmem:[#allocation5 + $0x10] sm:$0xf]
    %v129 = vld [vmem:[#allocation5 + $0x14] sm:$0xf]
    %v130 = vld [vmem:[#allocation5 + $0x18] sm:$0xf]
    %v131 = vld [vmem:[#allocation5 + $0x1c] sm:$0xf]
    %v132 = vld [vmem:[#allocation5 + $0x20] sm:$0xf]
    %v133 = vld [vmem:[#allocation5 + $0x24] sm:$0xf]
    %v134 = vld [vmem:[#allocation5 + $0x28] sm:$0xf]
    %v135 = vld [vmem:[#allocation5 + $0x2c] sm:$0xf]
    %v136 = vld [vmem:[#allocation5 + $0x30] sm:$0xf]
    %v137 = vld [vmem:[#allocation5 + $0x34] sm:$0xf]
    %v138 = vld [vmem:[#allocation5 + $0x38] sm:$0xf]
    %v139 = vld [vmem:[#allocation5 + $0x3c] sm:$0xf]
    %v140 = vld [vmem:[%s2] sm:$0x1]
    %v142 = vperm.slane %v140, 0
    %v146 = vunpack.c.l.b16 %v122
    %v147 = vunpack.c.l.b16 %v123
    %v148 = vpack.c.b16 %v147, %v146
    %v166 = vunpack.c.l.b16 %v124
    %v167 = vunpack.c.l.b16 %v125
    %v168 = vunpack.c.l.b16 %v126
    %v169 = vunpack.c.l.b16 %v127
    %v170 = vunpack.c.l.b16 %v128
    %v171 = vunpack.c.l.b16 %v129
    %v172 = vunpack.c.l.b16 %v130
    %v173 = vunpack.c.l.b16 %v131
    %v174 = vunpack.c.l.b16 %v132
    %v175 = vunpack.c.l.b16 %v133
    %v176 = vunpack.c.l.b16 %v134
    %v177 = vunpack.c.l.b16 %v135
    %v178 = vunpack.c.l.b16 %v136
    %v179 = vunpack.c.l.b16 %v137
    %v180 = vunpack.c.l.b16 %v138
    %v181 = vunpack.c.l.b16 %v139
    %v182 = vpack.c.b16 %v167, %v166
    %v183 = vpack.c.b16 %v169, %v168
    %v184 = vpack.c.b16 %v171, %v170
    %v185 = vpack.c.b16 %v173, %v172
    %v186 = vpack.c.b16 %v175, %v174
    %v187 = vpack.c.b16 %v177, %v176
    %v188 = vpack.c.b16 %v179, %v178
    %v189 = vpack.c.b16 %v181, %v180
    %198 = vmatpush.bf16.msra.mxu0 %v189
    %199 = vmatpush.bf16.msra.mxu0 %v188
    %200 = vmatpush.bf16.msra.mxu0 %v187
    %201 = vmatpush.bf16.msra.mxu0 %v186
    %202 = vmatpush.bf16.msra.mxu0 %v185
    %203 = vmatpush.bf16.msra.mxu0 %v184
    %204 = vmatpush.bf16.msra.mxu0 %v183
    %205 = vmatpush.bf16.msra.mxu0 %v182
    %206 = vmatmul.bf16.gmra.mxu0 %v148
    %v207 = vpop.f32.mrf.mxu0
    %v208 = vadd.f32 %v142, %v207
    %v209 = vpop.f32.mrf.mxu0
    %v210 = vadd.f32 %v142, %v209
    %211 = vdwg.mxu0
    %v212 = vmax.f32 %v208, 0.0
    %v213 = vmax.f32 %v210, 0.0
    %v214 = vpack.c.bf16 %v213, %v212
    %v215 = vld [vmem:[#allocation7] sm:$0xf]
    %v216 = vld [vmem:[#allocation7 + $0x4] sm:$0xf]
    %v217 = vld [vmem:[#allocation7 + $0x8] sm:$0xf]
    %v218 = vld [vmem:[#allocation7 + $0xc] sm:$0xf]
    %v219 = vld [vmem:[#allocation7 + $0x10] sm:$0xf]
    %v220 = vld [vmem:[#allocation7 + $0x14] sm:$0xf]
    %v221 = vld [vmem:[#allocation7 + $0x18] sm:$0xf]
    %v222 = vld [vmem:[#allocation7 + $0x1c] sm:$0xf]
    %v223 = vld [vmem:[#allocation7 + $0x20] sm:$0xf]
    %v224 = vld [vmem:[#allocation7 + $0x24] sm:$0xf]
    %v225 = vld [vmem:[#allocation7 + $0x28] sm:$0xf]
    %v226 = vld [vmem:[#allocation7 + $0x2c] sm:$0xf]
    %v227 = vld [vmem:[#allocation7 + $0x30] sm:$0xf]
    %v228 = vld [vmem:[#allocation7 + $0x34] sm:$0xf]
    %v229 = vld [vmem:[#allocation7 + $0x38] sm:$0xf]
    %v230 = vld [vmem:[#allocation7 + $0x3c] sm:$0xf]
    %v231 = vld [vmem:[#allocation8] sm:$0x1]
    %v233 = vperm.slane %v231, 0
    %v251 = vunpack.c.l.b16 %v215
    %v252 = vunpack.c.l.b16 %v216
    %v253 = vunpack.c.l.b16 %v217
    %v254 = vunpack.c.l.b16 %v218
    %v255 = vunpack.c.l.b16 %v219
    %v256 = vunpack.c.l.b16 %v220
    %v257 = vunpack.c.l.b16 %v221
    %v258 = vunpack.c.l.b16 %v222
    %v259 = vunpack.c.l.b16 %v223
    %v260 = vunpack.c.l.b16 %v224
    %v261 = vunpack.c.l.b16 %v225
    %v262 = vunpack.c.l.b16 %v226
    %v263 = vunpack.c.l.b16 %v227
    %v264 = vunpack.c.l.b16 %v228
    %v265 = vunpack.c.l.b16 %v229
    %v266 = vunpack.c.l.b16 %v230
    %v267 = vpack.c.b16 %v252, %v251
    %v268 = vpack.c.b16 %v254, %v253
    %v269 = vpack.c.b16 %v256, %v255
    %v270 = vpack.c.b16 %v258, %v257
    %v271 = vpack.c.b16 %v260, %v259
    %v272 = vpack.c.b16 %v262, %v261
    %v273 = vpack.c.b16 %v264, %v263
    %v274 = vpack.c.b16 %v266, %v265
    %283 = vmatpush.bf16.msra.mxu0 %v274
    %284 = vmatpush.bf16.msra.mxu0 %v273
    %285 = vmatpush.bf16.msra.mxu0 %v272
    %286 = vmatpush.bf16.msra.mxu0 %v271
    %287 = vmatpush.bf16.msra.mxu0 %v270
    %288 = vmatpush.bf16.msra.mxu0 %v269
    %289 = vmatpush.bf16.msra.mxu0 %v268
    %290 = vmatpush.bf16.msra.mxu0 %v267
    %291 = vmatmul.bf16.gmra.mxu0 %v214
    %v292 = vpop.f32.mrf.mxu0
    %v293 = vadd.f32 %v233, %v292
    %v294 = vpop.f32.mrf.mxu0
    %v295 = vadd.f32 %v233, %v294
    %296 = vdwg.mxu0
    %v297 = vmax.f32 %v293, 0.0
    %v298 = vmax.f32 %v295, 0.0
    %v299 = vpack.c.bf16 %v298, %v297
    %v300 = vld [vmem:[#allocation10] sm:$0xff]
    %v301 = vld [vmem:[#allocation10 + $0x8] sm:$0xff]
    %v302 = vld [vmem:[#allocation10 + $0x10] sm:$0xff]
    %v303 = vld [vmem:[#allocation10 + $0x18] sm:$0xff]
    %v304 = vld [vmem:[#allocation10 + $0x20] sm:$0xff]
    %v305 = vld [vmem:[#allocation10 + $0x28] sm:$0xff]
    %v306 = vld [vmem:[#allocation10 + $0x30] sm:$0xff]
    %v307 = vld [vmem:[#allocation10 + $0x38] sm:$0xff]
    %v308 = vld [vmem:[#allocation10 + $0x40] sm:$0xff]
    %v309 = vld [vmem:[#allocation10 + $0x48] sm:$0xff]
    %v310 = vld [vmem:[#allocation10 + $0x50] sm:$0xff]
    %v311 = vld [vmem:[#allocation10 + $0x58] sm:$0xff]
    %v312 = vld [vmem:[#allocation10 + $0x60] sm:$0xff]
    %v313 = vld [vmem:[#allocation10 + $0x68] sm:$0xff]
    %v314 = vld [vmem:[#allocation10 + $0x70] sm:$0xff]
    %v315 = vld [vmem:[#allocation10 + $0x78] sm:$0xff]
    %v316 = vld [vmem:[%s6] sm:$0x3]
    %v318 = vperm.slane %v316, 0
    %v319 = vperm.slane %v316, 1
    %v338 = vunpack.c.l.b16 %v300
    %v339 = vunpack.c.h.b16 %v300
    %v340 = vunpack.c.l.b16 %v301
    %v341 = vunpack.c.h.b16 %v301
    %v342 = vunpack.c.l.b16 %v302
    %v343 = vunpack.c.h.b16 %v302
    %v344 = vunpack.c.l.b16 %v303
    %v345 = vunpack.c.h.b16 %v303
    %v346 = vunpack.c.l.b16 %v304
    %v347 = vunpack.c.h.b16 %v304
    %v348 = vunpack.c.l.b16 %v305
    %v349 = vunpack.c.h.b16 %v305
    %v350 = vunpack.c.l.b16 %v306
    %v351 = vunpack.c.h.b16 %v306
    %v352 = vunpack.c.l.b16 %v307
    %v353 = vunpack.c.h.b16 %v307
    %v354 = vunpack.c.l.b16 %v308
    %v355 = vunpack.c.h.b16 %v308
    %v356 = vunpack.c.l.b16 %v309
    %v357 = vunpack.c.h.b16 %v309
    %v358 = vunpack.c.l.b16 %v310
    %v359 = vunpack.c.h.b16 %v310
    %v360 = vunpack.c.l.b16 %v311
    %v361 = vunpack.c.h.b16 %v311
    %v362 = vunpack.c.l.b16 %v312
    %v363 = vunpack.c.h.b16 %v312
    %v364 = vunpack.c.l.b16 %v313
    %v365 = vunpack.c.h.b16 %v313
    %v366 = vunpack.c.l.b16 %v314
    %v367 = vunpack.c.h.b16 %v314
    %v368 = vunpack.c.l.b16 %v315
    %v369 = vunpack.c.h.b16 %v315
    %v370 = vpack.c.b16 %v340, %v338
    %v371 = vpack.c.b16 %v341, %v339
    %v372 = vpack.c.b16 %v344, %v342
    %v373 = vpack.c.b16 %v345, %v343
    %v374 = vpack.c.b16 %v348, %v346
    %v375 = vpack.c.b16 %v349, %v347
    %v376 = vpack.c.b16 %v352, %v350
    %v377 = vpack.c.b16 %v353, %v351
    %v378 = vpack.c.b16 %v356, %v354
    %v379 = vpack.c.b16 %v357, %v355
    %v380 = vpack.c.b16 %v360, %v358
    %v381 = vpack.c.b16 %v361, %v359
    %v382 = vpack.c.b16 %v364, %v362
    %v383 = vpack.c.b16 %v365, %v363
    %v384 = vpack.c.b16 %v368, %v366
    %v385 = vpack.c.b16 %v369, %v367
    %402 = vmatpush.bf16.msra.mxu0 %v384
    %403 = vmatpush.bf16.msra.mxu0 %v382
    %404 = vmatpush.bf16.msra.mxu0 %v380
    %405 = vmatpush.bf16.msra.mxu0 %v378
    %406 = vmatpush.bf16.msra.mxu0 %v376
    %407 = vmatpush.bf16.msra.mxu0 %v374
    %408 = vmatpush.bf16.msra.mxu0 %v372
    %409 = vmatpush.bf16.msra.mxu0 %v370
    %410 = vmatmul.bf16.gmra.mxu0 %v299
    %v411 = vpop.f32.mrf.mxu0
    %v412 = vadd.f32 %v318, %v411
    %v413 = vpop.f32.mrf.mxu0
    %v414 = vadd.f32 %v318, %v413
    %415 = vdwg.mxu0
    %416 = vmatpush.bf16.msra.mxu0 %v385
    %417 = vmatpush.bf16.msra.mxu0 %v383
    %418 = vmatpush.bf16.msra.mxu0 %v381
    %419 = vmatpush.bf16.msra.mxu0 %v379
    %420 = vmatpush.bf16.msra.mxu0 %v377
    %421 = vmatpush.bf16.msra.mxu0 %v375
    %422 = vmatpush.bf16.msra.mxu0 %v373
    %423 = vmatpush.bf16.msra.mxu0 %v371
    %424 = vmatmul.bf16.gmra.mxu0 %v299
    %v425 = vpop.f32.mrf.mxu0
    %v426 = vadd.f32 %v319, %v425
    %v427 = vpop.f32.mrf.mxu0
    %v428 = vadd.f32 %v319, %v427
    %429 = vdwg.mxu0
    %v430 = vmax.f32 %v426, -20.0
    %v431 = vmax.f32 %v428, -20.0
    %v432 = vmin.f32 %v430, 2.0
    %v433 = vmin.f32 %v431, 2.0
    %v434 = vmul.f32 %v432, 1.442695
    %v435 = vpow.pop %v434
    %v436 = vmul.f32 %v433, 1.442695
    %v437 = vpow.pop %v436
    %v438 = vld [vmem:[#allocation11] sm:$0xff]
    %v439 = vld [vmem:[#allocation11 + $0x8] sm:$0xff]
    %v440 = vmul.f32 %v435, %v438
    %v441 = vmul.f32 %v437, %v439
    %v442 = vadd.f32 %v412, %v440
    %v443 = vadd.f32 %v414, %v441
    %v444 = vtanh.pop %v442
    %v445 = vtanh.pop %v443
    %v446 = vmul.f32 %v438, -0.5
    %v447 = vmul.f32 %v439, -0.5
    %v448 = vmul.f32 %v446, %v438
    %v449 = vmul.f32 %v447, %v439
    %v450 = vsub.f32 %v448, %v432
    %v451 = vsub.f32 %v449, %v433
    %v452 = vsub.f32 %v450, 0.9189385
    %v453 = vsub.f32 %v451, 0.9189385
    %v454 = vmul.f32 %v444, %v444
    %v455 = vmul.f32 %v445, %v445
    %v456 = vsub.f32 1.0, %v454
    %v457 = vsub.f32 1.0, %v455
    %v458 = vadd.f32 %v456, 1e-06
    %v459 = vadd.f32 %v457, 1e-06
    %v460 = vlog2.pop %v458
    %v461 = vmul.f32 %v460, 0.6931472
    %v462 = vlog2.pop %v459
    %v463 = vmul.f32 %v462, 0.6931472
    %v464 = vsub.f32 %v452, %v461
    %v465 = vsub.f32 %v453, %v463
    %v466 = vlaneseq
    %v467 = vand.u32 %v466, 127
    %vm468 = vcmp.lt.s32.totalorder %v467, 4
    %v469 = vsel %vm468, %v464, 0.0
    %v470 = vsel %vm468, %v465, 0.0
    %471 = vadd.xlane.f32.xlu0 %v469
    %v472 = vpop.xlane.xlu0 %471
    %473 = vadd.xlane.f32.xlu0 %v470
    %v474 = vpop.xlane.xlu0 %473
    %475 = vst [vmem:[#allocation13] sm:$0xff] %v444
    %476 = vst [vmem:[#allocation13 + $0x8] sm:$0xff] %v442
    %477 = vst [vmem:[#allocation13 + $0x10] sm:$0xff] %v472
    %478 = vst [vmem:[#allocation13 + $0x18] sm:$0xff] %v445
    %479 = vst [vmem:[#allocation13 + $0x20] sm:$0xff] %v443
    %480 = vst [vmem:[#allocation13 + $0x28] sm:$0xff] %v474
    // Predicated region
    $region58: #{tpu_custom_call.1} parent=1 // pred_check
      _
    $region59: #{tpu_custom_call.1} parent=1 // pred_check_branch
      %482 = sbr.rel (0) target = $region61
    $region60: #{tpu_custom_call.1} parent=1 // pred_region
      %484 = vsyncadd [#allocation4], 0
      %s485 = sshll.u32 [#allocation13], 4
      %s486 = int_to_ptr.vmem [resolvable:$true] %s485
      %s487 = sshll.u32 %s8, 4
      %s488 = int_to_ptr.hbm [resolvable:$true] %s487
      %493 = dma.vmem_to_hbm [thread:$0]  %s486, 768, %s488, [#allocation4], 384, 384, 24
    $region61: #{tpu_custom_call.1} parent=1 // pred_fallthru
      _
    // Predicated region
    $region62: #{tpu_custom_call.1} parent=1 // pred_check
      _
    $region63: #{tpu_custom_call.1} parent=1 // pred_check_branch
      %495 = sbr.rel (0) target = $region65
    $region64: #{tpu_custom_call.1} parent=1 // pred_region
      %497 = dma.done [#allocation4], 768
    $region65: #{tpu_custom_call.1} parent=1 // pred_fallthru
      _
    %498 = vsyncpa [#allocation3], 1
    %499 = vsyncpa [#allocation6], 1
    %500 = vsyncpa [#allocation9], 1
    %501 = vsyncpa [#allocation12], 1
    %502 = vsyncpa [#allocation4], 1

// kernel: tpu_custom_call.1
$region0: #{tpu_custom_call.1}
  #allocation0 [shape = 'u32[]', space=smem, size = 0x4, offset = 0x4, fixed_abs, tag = 'smem constant byte address 0x4 - core index']
  #allocation1 [shape = 'u32[72,128]{1,0:T(1,128)}', space=vmem, size = 0x9000, scoped, tag = 'internal scratch']
  %s0 = inlined_call_operand.hbm [shape: bf16[16,128], index: 0, kind: input, shape index: {}]
  %s1 = inlined_call_operand.hbm [shape: bf16[128,128], index: 1, kind: input, shape index: {}]
  %s2 = inlined_call_operand.vmem [shape: f32[1,128], index: 2, kind: input, shape index: {}]
  %s3 = inlined_call_operand.hbm [shape: bf16[128,128], index: 3, kind: input, shape index: {}]
  %s4 = inlined_call_operand.hbm [shape: f32[1,128], index: 4, kind: input, shape index: {}]
  %s5 = inlined_call_operand.hbm [shape: bf16[128,256], index: 5, kind: input, shape index: {}]
  %s6 = inlined_call_operand.vmem [shape: f32[1,256], index: 6, kind: input, shape index: {}]
  %s7 = inlined_call_operand.hbm [shape: f32[16,128], index: 7, kind: input, shape index: {}]
  %s8 = inlined_call_operand.hbm [shape: f32[16,384], index: 8, kind: output, shape index: {}]
  %s9 = sld [smem:[#allocation0]]
  $region66: #{tpu_custom_call.1} parent=0
    _
  %s11 = ssub.s32 1, %s9
  %s12 = scalar_select 0, %s11, %s9
  $region1: #{tpu_custom_call.1} parent=0
    #allocation2 [shape = 'u8[4096]{0}', space=vmem, size = 0x1000, scoped, tag = 'input window, operand 0, single buffered']
    #allocation3 [shape = 's32[1]{0}', space=sflag, size = 0x4, scoped, tag = 'scoped memory for tpu_custom_call.1']
    #allocation4 [shape = 's32[1]{0}', space=sflag, size = 0x4, scoped, tag = 'scoped memory for tpu_custom_call.1']
    #allocation5 [shape = 'u8[32768]{0}', space=vmem, size = 0x8000, scoped, tag = 'input window, operand 1, single buffered']
    #allocation6 [shape = 's32[1]{0}', space=sflag, size = 0x4, scoped, tag = 'scoped memory for tpu_custom_call.1']
    #allocation7 [shape = 'u8[32768]{0}', space=vmem, size = 0x8000, scoped, tag = 'input window, operand 3, single buffered']
    #allocation8 [shape = 'u8[512]{0}', space=vmem, size = 0x400, scoped, tag = 'input window, operand 4, single buffered']
    #allocation9 [shape = 's32[1]{0}', space=sflag, size = 0x4, scoped, tag = 'scoped memory for tpu_custom_call.1']
    #allocation10 [shape = 'u8[65536]{0}', space=vmem, size = 0x10000, scoped, tag = 'input window, operand 5, single buffered']
    #allocation11 [shape = 'u8[8192]{0}', space=vmem, size = 0x2000, scoped, tag = 'input window, operand 7, single buffered']
    #allocation12 [shape = 's32[1]{0}', space=sflag, size = 0x4, scoped, tag = 'scoped memory for tpu_custom_call.1']
    #allocation13 [shape = 'u8[24576]{0}', space=vmem, size = 0x6000, scoped, tag = 'output window, operand 0, single buffered']
    %13 = vsyncpa [#allocation3], 0
    %14 = vsyncpa [#allocation6], 0
    %15 = vsyncpa [#allocation9], 0
    %16 = vsyncpa [#allocation12], 0
    %17 = vsyncpa [#allocation4], 0
    // Predicated region
    $region2: #{tpu_custom_call.1} parent=1 // pred_check
      _
    $region3: #{tpu_custom_call.1} parent=1 // pred_check_branch
      %19 = sbr.rel (0) target = $region5
    $region4: #{tpu_custom_call.1} parent=1 // pred_region
      %21 = vsyncadd [#allocation3], 0
      %s22 = sshll.u32 %s0, 4
      %s23 = int_to_ptr.hbm [resolvable:$true] %s22
      %s24 = sshll.u32 [#allocation2], 4
      %s25 = int_to_ptr.vmem [resolvable:$true] %s24
      %30 = dma.hbm_to_vmem [thread:$0]  %s23, 128, %s25, [#allocation3], 64, 64, 4
    $region5: #{tpu_custom_call.1} parent=1 // pred_fallthru
      _
    // Predicated region
    $region6: #{tpu_custom_call.1} parent=1 // pred_check
      _
    $region7: #{tpu_custom_call.1} parent=1 // pred_check_branch
      %32 = sbr.rel (0) target = $region9
    $region8: #{tpu_custom_call.1} parent=1 // pred_region
      %34 = vsyncadd [#allocation6], 0
      %s35 = sshll.u32 %s1, 4
      %s36 = int_to_ptr.hbm [resolvable:$true] %s35
      %s37 = sshll.u32 [#allocation5], 4
      %s38 = int_to_ptr.vmem [resolvable:$true] %s37
      %43 = dma.hbm_to_vmem [thread:$0]  %s36, 1024, %s38, [#allocation6], 64, 64, 4
    $region9: #{tpu_custom_call.1} parent=1 // pred_fallthru
      _
    // Predicated region
    $region10: #{tpu_custom_call.1} parent=1 // pred_check
      _
    $region11: #{tpu_custom_call.1} parent=1 // pred_check_branch
      %45 = sbr.rel (0) target = $region13
    $region12: #{tpu_custom_call.1} parent=1 // pred_region
      _
    $region13: #{tpu_custom_call.1} parent=1 // pred_fallthru
      _
    // Predicated region
    $region14: #{tpu_custom_call.1} parent=1 // pred_check
      _
    $region15: #{tpu_custom_call.1} parent=1 // pred_check_branch
      %47 = sbr.rel (0) target = $region17
    $region16: #{tpu_custom_call.1} parent=1 // pred_region
      %49 = vsyncadd [#allocation6], 0
      %s50 = sshll.u32 %s3, 4
      %s51 = int_to_ptr.hbm [resolvable:$true] %s50
      %s52 = sshll.u32 [#allocation7], 4
      %s53 = int_to_ptr.vmem [resolvable:$true] %s52
      %58 = dma.hbm_to_vmem [thread:$0]  %s51, 1024, %s53, [#allocation6], 64, 64, 4
    $region17: #{tpu_custom_call.1} parent=1 // pred_fallthru
      _
    // Predicated region
    $region18: #{tpu_custom_call.1} parent=1 // pred_check
      _
    $region19: #{tpu_custom_call.1} parent=1 // pred_check_branch
      %60 = sbr.rel (0) target = $region21
    $region20: #{tpu_custom_call.1} parent=1 // pred_region
      %62 = vsyncadd [#allocation9], 0
      %s64 = sshll.u32 %s4, 4
      %s65 = int_to_ptr.hbm [resolvable:$true] %s64
      %s66 = sshll.u32 [#allocation8], 4
      %s67 = int_to_ptr.vmem [resolvable:$true] %s66
      %69 = dma.hbm_to_vmem [thread:$0]  %s65, 16, %s67, [#allocation9]
    $region21: #{tpu_custom_call.1} parent=1 // pred_fallthru
      _
    // Predicated region
    $region22: #{tpu_custom_call.1} parent=1 // pred_check
      _
    $region23: #{tpu_custom_call.1} parent=1 // pred_check_branch
      %71 = sbr.rel (0) target = $region25
    $region24: #{tpu_custom_call.1} parent=1 // pred_region
      %73 = vsyncadd [#allocation9], 0
      %s74 = sshll.u32 %s5, 4
      %s75 = int_to_ptr.hbm [resolvable:$true] %s74
      %s76 = sshll.u32 [#allocation10], 4
      %s77 = int_to_ptr.vmem [resolvable:$true] %s76
      %82 = dma.hbm_to_vmem [thread:$0]  %s75, 2048, %s77, [#allocation9], 128, 128, 8
    $region25: #{tpu_custom_call.1} parent=1 // pred_fallthru
      _
    // Predicated region
    $region26: #{tpu_custom_call.1} parent=1 // pred_check
      _
    $region27: #{tpu_custom_call.1} parent=1 // pred_check_branch
      %84 = sbr.rel (0) target = $region29
    $region28: #{tpu_custom_call.1} parent=1 // pred_region
      _
    $region29: #{tpu_custom_call.1} parent=1 // pred_fallthru
      _
    // Predicated region
    $region30: #{tpu_custom_call.1} parent=1 // pred_check
      _
    $region31: #{tpu_custom_call.1} parent=1 // pred_check_branch
      %86 = sbr.rel (0) target = $region33
    $region32: #{tpu_custom_call.1} parent=1 // pred_region
      %88 = vsyncadd [#allocation12], 0
      %s89 = sshll.u32 %s7, 4
      %s90 = int_to_ptr.hbm [resolvable:$true] %s89
      %s91 = sshll.u32 [#allocation11], 4
      %s92 = int_to_ptr.vmem [resolvable:$true] %s91
      %97 = dma.hbm_to_vmem [thread:$0]  %s90, 256, %s92, [#allocation12], 128, 128, 8
    $region33: #{tpu_custom_call.1} parent=1 // pred_fallthru
      _
    // Predicated region
    $region34: #{tpu_custom_call.1} parent=1 // pred_check
      _
    $region35: #{tpu_custom_call.1} parent=1 // pred_check_branch
      %99 = sbr.rel (0) target = $region37
    $region36: #{tpu_custom_call.1} parent=1 // pred_region
      %101 = dma.done [#allocation3], 128
    $region37: #{tpu_custom_call.1} parent=1 // pred_fallthru
      _
    // Predicated region
    $region38: #{tpu_custom_call.1} parent=1 // pred_check
      _
    $region39: #{tpu_custom_call.1} parent=1 // pred_check_branch
      %103 = sbr.rel (0) target = $region41
    $region40: #{tpu_custom_call.1} parent=1 // pred_region
      %105 = dma.done [#allocation6], 1024
    $region41: #{tpu_custom_call.1} parent=1 // pred_fallthru
      _
    // Predicated region
    $region42: #{tpu_custom_call.1} parent=1 // pred_check
      _
    $region43: #{tpu_custom_call.1} parent=1 // pred_check_branch
      %107 = sbr.rel (0) target = $region45
    $region44: #{tpu_custom_call.1} parent=1 // pred_region
      %109 = dma.done [#allocation6], 1024
    $region45: #{tpu_custom_call.1} parent=1 // pred_fallthru
      _
    // Predicated region
    $region46: #{tpu_custom_call.1} parent=1 // pred_check
      _
    $region47: #{tpu_custom_call.1} parent=1 // pred_check_branch
      %111 = sbr.rel (0) target = $region49
    $region48: #{tpu_custom_call.1} parent=1 // pred_region
      %113 = dma.done [#allocation9], 16
    $region49: #{tpu_custom_call.1} parent=1 // pred_fallthru
      _
    // Predicated region
    $region50: #{tpu_custom_call.1} parent=1 // pred_check
      _
    $region51: #{tpu_custom_call.1} parent=1 // pred_check_branch
      %115 = sbr.rel (0) target = $region53
    $region52: #{tpu_custom_call.1} parent=1 // pred_region
      %117 = dma.done [#allocation9], 2048
    $region53: #{tpu_custom_call.1} parent=1 // pred_fallthru
      _
    // Predicated region
    $region54: #{tpu_custom_call.1} parent=1 // pred_check
      _
    $region55: #{tpu_custom_call.1} parent=1 // pred_check_branch
      %119 = sbr.rel (0) target = $region57
    $region56: #{tpu_custom_call.1} parent=1 // pred_region
      %121 = dma.done [#allocation12], 256
    $region57: #{tpu_custom_call.1} parent=1 // pred_fallthru
      _
    %v122 = vld [vmem:[#allocation2] sm:$0xf]
    %v123 = vld [vmem:[#allocation2 + $0x4] sm:$0xf]
    %v124 = vld [vmem:[#allocation5] sm:$0xf]
    %v125 = vld [vmem:[#allocation5 + $0x4] sm:$0xf]
    %v126 = vld [vmem:[#allocation5 + $0x8] sm:$0xf]
    %v127 = vld [vmem:[#allocation5 + $0xc] sm:$0xf]
    %v128 = vld [vmem:[#allocation5 + $0x10] sm:$0xf]
    %v129 = vld [vmem:[#allocation5 + $0x14] sm:$0xf]
    %v130 = vld [vmem:[#allocation5 + $0x18] sm:$0xf]
    %v131 = vld [vmem:[#allocation5 + $0x1c] sm:$0xf]
    %v132 = vld [vmem:[#allocation5 + $0x20] sm:$0xf]
    %v133 = vld [vmem:[#allocation5 + $0x24] sm:$0xf]
    %v134 = vld [vmem:[#allocation5 + $0x28] sm:$0xf]
    %v135 = vld [vmem:[#allocation5 + $0x2c] sm:$0xf]
    %v136 = vld [vmem:[#allocation5 + $0x30] sm:$0xf]
    %v137 = vld [vmem:[#allocation5 + $0x34] sm:$0xf]
    %v138 = vld [vmem:[#allocation5 + $0x38] sm:$0xf]
    %v139 = vld [vmem:[#allocation5 + $0x3c] sm:$0xf]
    %v140 = vld [vmem:[%s2] sm:$0x1]
    %v142 = vperm.slane %v140, 0
    %v146 = vunpack.c.l.b16 %v122
    %v147 = vunpack.c.l.b16 %v123
    %v148 = vpack.c.b16 %v147, %v146
    %v166 = vunpack.c.l.b16 %v124
    %v167 = vunpack.c.l.b16 %v125
    %v168 = vunpack.c.l.b16 %v126
    %v169 = vunpack.c.l.b16 %v127
    %v170 = vunpack.c.l.b16 %v128
    %v171 = vunpack.c.l.b16 %v129
    %v172 = vunpack.c.l.b16 %v130
    %v173 = vunpack.c.l.b16 %v131
    %v174 = vunpack.c.l.b16 %v132
    %v175 = vunpack.c.l.b16 %v133
    %v176 = vunpack.c.l.b16 %v134
    %v177 = vunpack.c.l.b16 %v135
    %v178 = vunpack.c.l.b16 %v136
    %v179 = vunpack.c.l.b16 %v137
    %v180 = vunpack.c.l.b16 %v138
    %v181 = vunpack.c.l.b16 %v139
    %v182 = vpack.c.b16 %v167, %v166
    %v183 = vpack.c.b16 %v169, %v168
    %v184 = vpack.c.b16 %v171, %v170
    %v185 = vpack.c.b16 %v173, %v172
    %v186 = vpack.c.b16 %v175, %v174
    %v187 = vpack.c.b16 %v177, %v176
    %v188 = vpack.c.b16 %v179, %v178
    %v189 = vpack.c.b16 %v181, %v180
    %198 = vmatpush.bf16.msra.mxu0 %v189
    %199 = vmatpush.bf16.msra.mxu0 %v188
    %200 = vmatpush.bf16.msra.mxu0 %v187
    %201 = vmatpush.bf16.msra.mxu0 %v186
    %202 = vmatpush.bf16.msra.mxu0 %v185
    %203 = vmatpush.bf16.msra.mxu0 %v184
    %204 = vmatpush.bf16.msra.mxu0 %v183
    %205 = vmatpush.bf16.msra.mxu0 %v182
    %206 = vmatmul.bf16.gmra.mxu0 %v148
    %v207 = vpop.f32.mrf.mxu0
    %v208 = vadd.f32 %v142, %v207
    %v209 = vpop.f32.mrf.mxu0
    %v210 = vadd.f32 %v142, %v209
    %211 = vdwg.mxu0
    %v212 = vmax.f32 %v208, 0.0
    %v213 = vmax.f32 %v210, 0.0
    %v214 = vpack.c.bf16 %v213, %v212
    %v215 = vld [vmem:[#allocation7] sm:$0xf]
    %v216 = vld [vmem:[#allocation7 + $0x4] sm:$0xf]
    %v217 = vld [vmem:[#allocation7 + $0x8] sm:$0xf]
    %v218 = vld [vmem:[#allocation7 + $0xc] sm:$0xf]
    %v219 = vld [vmem:[#allocation7 + $0x10] sm:$0xf]
    %v220 = vld [vmem:[#allocation7 + $0x14] sm:$0xf]
    %v221 = vld [vmem:[#allocation7 + $0x18] sm:$0xf]
    %v222 = vld [vmem:[#allocation7 + $0x1c] sm:$0xf]
    %v223 = vld [vmem:[#allocation7 + $0x20] sm:$0xf]
    %v224 = vld [vmem:[#allocation7 + $0x24] sm:$0xf]
    %v225 = vld [vmem:[#allocation7 + $0x28] sm:$0xf]
    %v226 = vld [vmem:[#allocation7 + $0x2c] sm:$0xf]
    %v227 = vld [vmem:[#allocation7 + $0x30] sm:$0xf]
    %v228 = vld [vmem:[#allocation7 + $0x34] sm:$0xf]
    %v229 = vld [vmem:[#allocation7 + $0x38] sm:$0xf]
    %v230 = vld [vmem:[#allocation7 + $0x3c] sm:$0xf]
    %v231 = vld [vmem:[#allocation8] sm:$0x1]
    %v233 = vperm.slane %v231, 0
    %v251 = vunpack.c.l.b16 %v215
    %v252 = vunpack.c.l.b16 %v216
    %v253 = vunpack.c.l.b16 %v217
    %v254 = vunpack.c.l.b16 %v218
    %v255 = vunpack.c.l.b16 %v219
    %v256 = vunpack.c.l.b16 %v220
    %v257 = vunpack.c.l.b16 %v221
    %v258 = vunpack.c.l.b16 %v222
    %v259 = vunpack.c.l.b16 %v223
    %v260 = vunpack.c.l.b16 %v224
    %v261 = vunpack.c.l.b16 %v225
    %v262 = vunpack.c.l.b16 %v226
    %v263 = vunpack.c.l.b16 %v227
    %v264 = vunpack.c.l.b16 %v228
    %v265 = vunpack.c.l.b16 %v229
    %v266 = vunpack.c.l.b16 %v230
    %v267 = vpack.c.b16 %v252, %v251
    %v268 = vpack.c.b16 %v254, %v253
    %v269 = vpack.c.b16 %v256, %v255
    %v270 = vpack.c.b16 %v258, %v257
    %v271 = vpack.c.b16 %v260, %v259
    %v272 = vpack.c.b16 %v262, %v261
    %v273 = vpack.c.b16 %v264, %v263
    %v274 = vpack.c.b16 %v266, %v265
    %283 = vmatpush.bf16.msra.mxu0 %v274
    %284 = vmatpush.bf16.msra.mxu0 %v273
    %285 = vmatpush.bf16.msra.mxu0 %v272
    %286 = vmatpush.bf16.msra.mxu0 %v271
    %287 = vmatpush.bf16.msra.mxu0 %v270
    %288 = vmatpush.bf16.msra.mxu0 %v269
    %289 = vmatpush.bf16.msra.mxu0 %v268
    %290 = vmatpush.bf16.msra.mxu0 %v267
    %291 = vmatmul.bf16.gmra.mxu0 %v214
    %v292 = vpop.f32.mrf.mxu0
    %v293 = vadd.f32 %v233, %v292
    %v294 = vpop.f32.mrf.mxu0
    %v295 = vadd.f32 %v233, %v294
    %296 = vdwg.mxu0
    %v297 = vmax.f32 %v293, 0.0
    %v298 = vmax.f32 %v295, 0.0
    %v299 = vpack.c.bf16 %v298, %v297
    %v300 = vld [vmem:[#allocation10] sm:$0xff]
    %v301 = vld [vmem:[#allocation10 + $0x8] sm:$0xff]
    %v302 = vld [vmem:[#allocation10 + $0x10] sm:$0xff]
    %v303 = vld [vmem:[#allocation10 + $0x18] sm:$0xff]
    %v304 = vld [vmem:[#allocation10 + $0x20] sm:$0xff]
    %v305 = vld [vmem:[#allocation10 + $0x28] sm:$0xff]
    %v306 = vld [vmem:[#allocation10 + $0x30] sm:$0xff]
    %v307 = vld [vmem:[#allocation10 + $0x38] sm:$0xff]
    %v308 = vld [vmem:[#allocation10 + $0x40] sm:$0xff]
    %v309 = vld [vmem:[#allocation10 + $0x48] sm:$0xff]
    %v310 = vld [vmem:[#allocation10 + $0x50] sm:$0xff]
    %v311 = vld [vmem:[#allocation10 + $0x58] sm:$0xff]
    %v312 = vld [vmem:[#allocation10 + $0x60] sm:$0xff]
    %v313 = vld [vmem:[#allocation10 + $0x68] sm:$0xff]
    %v314 = vld [vmem:[#allocation10 + $0x70] sm:$0xff]
    %v315 = vld [vmem:[#allocation10 + $0x78] sm:$0xff]
    %v316 = vld [vmem:[%s6] sm:$0x3]
    %v318 = vperm.slane %v316, 0
    %v319 = vperm.slane %v316, 1
    %v338 = vunpack.c.l.b16 %v300
    %v339 = vunpack.c.h.b16 %v300
    %v340 = vunpack.c.l.b16 %v301
    %v341 = vunpack.c.h.b16 %v301
    %v342 = vunpack.c.l.b16 %v302
    %v343 = vunpack.c.h.b16 %v302
    %v344 = vunpack.c.l.b16 %v303
    %v345 = vunpack.c.h.b16 %v303
    %v346 = vunpack.c.l.b16 %v304
    %v347 = vunpack.c.h.b16 %v304
    %v348 = vunpack.c.l.b16 %v305
    %v349 = vunpack.c.h.b16 %v305
    %v350 = vunpack.c.l.b16 %v306
    %v351 = vunpack.c.h.b16 %v306
    %v352 = vunpack.c.l.b16 %v307
    %v353 = vunpack.c.h.b16 %v307
    %v354 = vunpack.c.l.b16 %v308
    %v355 = vunpack.c.h.b16 %v308
    %v356 = vunpack.c.l.b16 %v309
    %v357 = vunpack.c.h.b16 %v309
    %v358 = vunpack.c.l.b16 %v310
    %v359 = vunpack.c.h.b16 %v310
    %v360 = vunpack.c.l.b16 %v311
    %v361 = vunpack.c.h.b16 %v311
    %v362 = vunpack.c.l.b16 %v312
    %v363 = vunpack.c.h.b16 %v312
    %v364 = vunpack.c.l.b16 %v313
    %v365 = vunpack.c.h.b16 %v313
    %v366 = vunpack.c.l.b16 %v314
    %v367 = vunpack.c.h.b16 %v314
    %v368 = vunpack.c.l.b16 %v315
    %v369 = vunpack.c.h.b16 %v315
    %v370 = vpack.c.b16 %v340, %v338
    %v371 = vpack.c.b16 %v341, %v339
    %v372 = vpack.c.b16 %v344, %v342
    %v373 = vpack.c.b16 %v345, %v343
    %v374 = vpack.c.b16 %v348, %v346
    %v375 = vpack.c.b16 %v349, %v347
    %v376 = vpack.c.b16 %v352, %v350
    %v377 = vpack.c.b16 %v353, %v351
    %v378 = vpack.c.b16 %v356, %v354
    %v379 = vpack.c.b16 %v357, %v355
    %v380 = vpack.c.b16 %v360, %v358
    %v381 = vpack.c.b16 %v361, %v359
    %v382 = vpack.c.b16 %v364, %v362
    %v383 = vpack.c.b16 %v365, %v363
    %v384 = vpack.c.b16 %v368, %v366
    %v385 = vpack.c.b16 %v369, %v367
    %402 = vmatpush.bf16.msra.mxu0 %v384
    %403 = vmatpush.bf16.msra.mxu0 %v382
    %404 = vmatpush.bf16.msra.mxu0 %v380
    %405 = vmatpush.bf16.msra.mxu0 %v378
    %406 = vmatpush.bf16.msra.mxu0 %v376
    %407 = vmatpush.bf16.msra.mxu0 %v374
    %408 = vmatpush.bf16.msra.mxu0 %v372
    %409 = vmatpush.bf16.msra.mxu0 %v370
    %410 = vmatmul.bf16.gmra.mxu0 %v299
    %v411 = vpop.f32.mrf.mxu0
    %v412 = vadd.f32 %v318, %v411
    %v413 = vpop.f32.mrf.mxu0
    %v414 = vadd.f32 %v318, %v413
    %415 = vdwg.mxu0
    %416 = vmatpush.bf16.msra.mxu0 %v385
    %417 = vmatpush.bf16.msra.mxu0 %v383
    %418 = vmatpush.bf16.msra.mxu0 %v381
    %419 = vmatpush.bf16.msra.mxu0 %v379
    %420 = vmatpush.bf16.msra.mxu0 %v377
    %421 = vmatpush.bf16.msra.mxu0 %v375
    %422 = vmatpush.bf16.msra.mxu0 %v373
    %423 = vmatpush.bf16.msra.mxu0 %v371
    %424 = vmatmul.bf16.gmra.mxu0 %v299
    %v425 = vpop.f32.mrf.mxu0
    %v426 = vadd.f32 %v319, %v425
    %v427 = vpop.f32.mrf.mxu0
    %v428 = vadd.f32 %v319, %v427
    %429 = vdwg.mxu0
    %v430 = vmax.f32 %v426, -20.0
    %v431 = vmax.f32 %v428, -20.0
    %v432 = vmin.f32 %v430, 2.0
    %v433 = vmin.f32 %v431, 2.0
    %v434 = vmul.f32 %v432, 1.442695
    %v435 = vpow.pop %v434
    %v436 = vmul.f32 %v433, 1.442695
    %v437 = vpow.pop %v436
    %v438 = vld [vmem:[#allocation11] sm:$0xff]
    %v439 = vld [vmem:[#allocation11 + $0x8] sm:$0xff]
    %v440 = vmul.f32 %v435, %v438
    %v441 = vmul.f32 %v437, %v439
    %v442 = vadd.f32 %v412, %v440
    %v443 = vadd.f32 %v414, %v441
    %v444 = vtanh.pop %v442
    %v445 = vtanh.pop %v443
    %v446 = vmul.f32 %v438, -0.5
    %v447 = vmul.f32 %v439, -0.5
    %v448 = vmul.f32 %v446, %v438
    %v449 = vmul.f32 %v447, %v439
    %v450 = vsub.f32 %v448, %v432
    %v451 = vsub.f32 %v449, %v433
    %v452 = vsub.f32 %v450, 0.9189385
    %v453 = vsub.f32 %v451, 0.9189385
    %v454 = vmul.f32 %v444, %v444
    %v455 = vmul.f32 %v445, %v445
    %v456 = vsub.f32 1.0, %v454
    %v457 = vsub.f32 1.0, %v455
    %v458 = vadd.f32 %v456, 1e-06
    %v459 = vadd.f32 %v457, 1e-06
    %v460 = vlog2.pop %v458
    %v461 = vmul.f32 %v460, 0.6931472
    %v462 = vlog2.pop %v459
    %v463 = vmul.f32 %v462, 0.6931472
    %v464 = vsub.f32 %v452, %v461
    %v465 = vsub.f32 %v453, %v463
    %v466 = vlaneseq
    %v467 = vand.u32 %v466, 127
    %vm468 = vcmp.lt.s32.totalorder %v467, 4
    %v469 = vsel %vm468, %v464, 0.0
    %v470 = vsel %vm468, %v465, 0.0
    %471 = vadd.xlane.f32.xlu0 %v469
    %v472 = vpop.xlane.xlu0 %471
    %473 = vadd.xlane.f32.xlu0 %v470
    %v474 = vpop.xlane.xlu0 %473
    %475 = vst [vmem:[#allocation13] sm:$0xff] %v444
    %476 = vst [vmem:[#allocation13 + $0x8] sm:$0xff] %v442
    %477 = vst [vmem:[#allocation13 + $0x10] sm:$0xff] %v472
    %478 = vst [vmem:[#allocation13 + $0x18] sm:$0xff] %v445
    %479 = vst [vmem:[#allocation13 + $0x20] sm:$0xff] %v443
    %480 = vst [vmem:[#allocation13 + $0x28] sm:$0xff] %v474
    // Predicated region
    $region58: #{tpu_custom_call.1} parent=1 // pred_check
      _
    $region59: #{tpu_custom_call.1} parent=1 // pred_check_branch
      %482 = sbr.rel (0) target = $region61
    $region60: #{tpu_custom_call.1} parent=1 // pred_region
      %484 = vsyncadd [#allocation4], 0
      %s485 = sshll.u32 [#allocation13], 4
      %s486 = int_to_ptr.vmem [resolvable:$true] %s485
      %s487 = sshll.u32 %s8, 4
      %s488 = int_to_ptr.hbm [resolvable:$true] %s487
      %493 = dma.vmem_to_hbm [thread:$0]  %s486, 768, %s488, [#allocation4], 384, 384, 24
    $region61: #{tpu_custom_call.1} parent=1 // pred_fallthru
      _
    // Predicated region
    $region62: #{tpu_custom_call.1} parent=1 // pred_check
      _
    $region63: #{tpu_custom_call.1} parent=1 // pred_check_branch
      %495 = sbr.rel (0) target = $region65
    $region64: #{tpu_custom_call.1} parent=1 // pred_region
      %497 = dma.done [#allocation4], 768
    $region65: #{tpu_custom_call.1} parent=1 // pred_fallthru
      _
    %498 = vsyncpa [#allocation3], 1
    %499 = vsyncpa [#allocation6], 1
    %500 = vsyncpa [#allocation9], 1
    %501 = vsyncpa [#allocation12], 1
    %502 = vsyncpa [#allocation4], 1

</llo_original>
